<compile_context>
chip_gen: v7x
topology: tpu7x:2x2x1
jax: 0.10.0
libtpu: 0.0.40
codegen_flags: <defaults>
</compile_context>

<pallas_src>
from functools import partial

import jax
import jax.numpy as jnp
from jax.experimental import pallas as pl
from jax.experimental.pallas import tpu as pltpu


def _auvi_lstm_kernel(maxlen_ref, len_ref, x_ref, wih_ref, whh_ref, b_ref,
                      wout_ref, bout_ref, y_ref, gates_sc):
    """One batch block of the LSTM subnet (whole time recurrence in-kernel).

    maxlen_ref : (nb,)          int32 SMEM  (scalar prefetch) per-block max len
    len_ref    : (BB, 1)        int32       sequence lengths of this block
    x_ref      : (1, T*BB, I)   f32         time-major rows (t*BB + b)
    wih_ref    : (I, 4H)        f32         W_ih^T (gates packed i|f|g|o)
    whh_ref    : (H, 4H)        f32         W_hh^T
    b_ref      : (1, 4H)        f32         b_ih + b_hh
    wout_ref   : (H, O)         f32         linear_1.weight^T
    bout_ref   : (1, O)         f32         linear_1.bias
    y_ref      : (BB, O)                    output block
    gates_sc   : (T*BB, 4H)     f32 VMEM    precomputed input projections
    """
    blk = pl.program_id(0)
    BB = len_ref.shape[0]
    H = whh_ref.shape[0]
    G = whh_ref.shape[1]          # 4*H (== 128 for H=32: one lane-aligned plane)

    # Input projection for every timestep of this block: one MXU matmul.
    gates_sc[...] = (jnp.dot(x_ref[0], wih_ref[...],
                             preferred_element_type=jnp.float32)
                     + b_ref[...])

    # Loop-invariant values hoisted out of the serial recurrence.
    lens = len_ref[...]                                         # (BB, 1)
    lane = jax.lax.broadcasted_iota(jnp.int32, (BB, G), 1)
    cell_lanes = (lane >= 2 * H) & (lane < 3 * H)               # g-gate lanes

    def step(t, carry):
        h_prev, c_prev = carry                                  # (BB, H) each
        row = pl.multiple_of(t * BB, BB)
        g = gates_sc[pl.ds(row, BB), :] + jnp.dot(
            h_prev, whh_ref[...], preferred_element_type=jnp.float32)  # (BB, 4H)
        # 2 EUP pushes for all four gates; select tanh on the cell-gate lanes.
        act = jnp.where(cell_lanes, jnp.tanh(g), jax.nn.sigmoid(g))
        i_g = act[:, 0 * H:1 * H]
        f_g = act[:, 1 * H:2 * H]
        g_g = act[:, 2 * H:3 * H]
        o_g = act[:, 3 * H:4 * H]
        c_new = f_g * c_prev + i_g * g_g
        h_new = o_g * jnp.tanh(c_new)
        # pack_padded_sequence semantics: only advance while t < length, so
        # the carry ends holding each row's last valid hidden state
        # (== final_states[0] of the PyTorch LSTM).
        mask = t < lens                                         # (BB, 1)
        h = jnp.where(mask, h_new, h_prev)
        c = jnp.where(mask, c_new, c_prev)
        return h, c

    h0 = jnp.zeros((BB, H), jnp.float32)
    c0 = jnp.zeros((BB, H), jnp.float32)
    h_final, _ = jax.lax.fori_loop(0, maxlen_ref[blk], step, (h0, c0))

    # self.dropout is identity in eval mode (inference semantics).
    y_ref[...] = (jnp.dot(h_final, wout_ref[...],
                          preferred_element_type=jnp.float32)
                  + bout_ref[...]).astype(y_ref.dtype)


def pack_auvi_params(w_ih, w_hh, b_ih, b_hh, w_out, b_out):
    """One-time packing of nn.LSTM / nn.Linear params (do NOT call per step)."""
    f32 = jnp.float32
    wih_t = jnp.asarray(w_ih, f32).T                    # (I, 4H)
    whh_t = jnp.asarray(w_hh, f32).T                    # (H, 4H)
    bias = jnp.asarray(b_ih + b_hh, f32).reshape(1, -1)  # (1, 4H)
    wout_t = jnp.asarray(w_out, f32).T                  # (H, O)
    bout = jnp.asarray(b_out, f32).reshape(1, -1)       # (1, O)
    return (wih_t, whh_t, bias, wout_t, bout)


@partial(jax.jit, static_argnames=("num_batch_blocks",))
def auvi_subnet_forward(x, lengths, wih_t, whh_t, bias, wout_t, bout,
                        num_batch_blocks=1):
    """x: (B, T, in_size) f32, lengths: (B,) int -> (B, out_size).

    num_batch_blocks: set to 2 on v7x (two TensorCores) when B >= 16; keep 1
    on v5e/v6e so the serial recurrence is not lengthened.
    """
    B0, T, I = x.shape
    H = whh_t.shape[0]
    G = whh_t.shape[1]
    O = wout_t.shape[1]
    nb = num_batch_blocks
    f32 = jnp.float32

    # Pad batch with zero-length rows so every (B, .) plane is full sublane
    # tiles and the batch splits evenly across blocks.
    pad = (-B0) % (8 * nb)
    if pad:
        x = jnp.concatenate([x, jnp.zeros((pad, T, I), x.dtype)], axis=0)
        lengths = jnp.concatenate(
            [lengths, jnp.zeros((pad,), lengths.dtype)], axis=0)
    B = B0 + pad
    BB = B // nb

    # Time-major within each batch block: row t*BB + b_local.
    x_tm = jnp.transpose(x.astype(f32), (1, 0, 2))               # (T, B, I)
    if nb == 1:
        x_blk = x_tm.reshape(1, T * B, I)
    else:
        x_blk = (x_tm.reshape(T, nb, BB, I)
                 .transpose((1, 0, 2, 3))
                 .reshape(nb, T * BB, I))

    lengths2d = lengths.astype(jnp.int32).reshape(B, 1)
    # Per-block max length (capped at T) -> SMEM via scalar prefetch; each
    # block's serial loop only runs its own max length.
    maxlen = jnp.minimum(jnp.max(lengths2d.reshape(nb, BB), axis=1),
                         T).astype(jnp.int32)                    # (nb,)

    y = pl.pallas_call(
        _auvi_lstm_kernel,
        out_shape=jax.ShapeDtypeStruct((B, O), x.dtype),
        grid_spec=pltpu.PrefetchScalarGridSpec(
            num_scalar_prefetch=1,                   # maxlen -> SMEM
            grid=(nb,),
            in_specs=[
                pl.BlockSpec((BB, 1), lambda i, ml: (i, 0)),           # lengths
                pl.BlockSpec((1, T * BB, I), lambda i, ml: (i, 0, 0)),  # x block
                pl.BlockSpec((I, G), lambda i, ml: (0, 0)),            # W_ih^T
                pl.BlockSpec((H, G), lambda i, ml: (0, 0)),            # W_hh^T
                pl.BlockSpec((1, G), lambda i, ml: (0, 0)),            # bias
                pl.BlockSpec((H, O), lambda i, ml: (0, 0)),            # W_out^T
                pl.BlockSpec((1, O), lambda i, ml: (0, 0)),            # b_out
            ],
            out_specs=pl.BlockSpec((BB, O), lambda i, ml: (i, 0)),
            scratch_shapes=[
                pltpu.VMEM((T * BB, G), jnp.float32),                  # gates
            ],
        ),
        compiler_params=pltpu.CompilerParams(
            dimension_semantics=("parallel",)),
    )(maxlen, lengths2d, x_blk, wih_t, whh_t, bias, wout_t, bout)

    return y[:B0] if pad else y


def _reference_forward(x, lengths, w_ih, w_hh, b_ih, b_hh, w_out, b_out):
    """Pure-JAX reference (lax.scan LSTM with length masking)."""
    B, T, I = x.shape
    H = w_hh.shape[1]
    bias = b_ih + b_hh

    def step(carry, inp):
        h, c = carry
        x_t, t = inp
        gates = x_t @ w_ih.T + h @ w_hh.T + bias
        i_g = jax.nn.sigmoid(gates[:, 0 * H:1 * H])
        f_g = jax.nn.sigmoid(gates[:, 1 * H:2 * H])
        g_g = jnp.tanh(gates[:, 2 * H:3 * H])
        o_g = jax.nn.sigmoid(gates[:, 3 * H:4 * H])
        c_new = f_g * c + i_g * g_g
        h_new = o_g * jnp.tanh(c_new)
        mask = (t < lengths)[:, None]
        h = jnp.where(mask, h_new, h)
        c = jnp.where(mask, c_new, c)
        return (h, c), None

    h0 = jnp.zeros((B, H), jnp.float32)
    c0 = jnp.zeros((B, H), jnp.float32)
    (h_final, _), _ = jax.lax.scan(
        step, (h0, c0), (jnp.transpose(x, (1, 0, 2)), jnp.arange(T)))
    return h_final @ w_out.T + b_out


if __name__ == "__main__":
    # Small shapes consistent with the module's forward signature.
    B, T, IN, HID, OUT = 8, 6, 16, 32, 16

    key = jax.random.PRNGKey(0)
    ks = jax.random.split(key, 8)
    bound = 1.0 / (HID ** 0.5)

    x = jax.random.normal(ks[0], (B, T, IN), dtype=jnp.float32)
    lengths = jnp.array([6, 3, 5, 1, 4, 6, 2, 6], dtype=jnp.int32)

    # nn.LSTM(IN, HID) parameters, deterministic uniform(-1/sqrt(H), 1/sqrt(H))
    w_ih = jax.random.uniform(ks[1], (4 * HID, IN), minval=-bound, maxval=bound)
    w_hh = jax.random.uniform(ks[2], (4 * HID, HID), minval=-bound, maxval=bound)
    b_ih = jax.random.uniform(ks[3], (4 * HID,), minval=-bound, maxval=bound)
    b_hh = jax.random.uniform(ks[4], (4 * HID,), minval=-bound, maxval=bound)
    # nn.Linear(HID, OUT)
    w_out = jax.random.uniform(ks[5], (OUT, HID), minval=-bound, maxval=bound)
    b_out = jax.random.uniform(ks[6], (OUT,), minval=-bound, maxval=bound)

    # One-time weight packing, outside the jitted hot path.
    packed = pack_auvi_params(w_ih, w_hh, b_ih, b_hh, w_out, b_out)

    y = auvi_subnet_forward(x, lengths, *packed)
    y = jax.block_until_ready(y)

    y_ref = _reference_forward(x, lengths, w_ih, w_hh, b_ih, b_hh, w_out, b_out)
    assert y.shape == (B, OUT)
    assert jnp.allclose(y, y_ref, atol=1e-5, rtol=1e-5), "mismatch vs reference"

    print("KERNEL_OK")
</pallas_src>

<mosaic_0001>
module attributes {stable_mosaic.version = 11 : i64} {
  func.func @_auvi_lstm_kernel(%arg0: i32, %arg1: memref<1xi32, #tpu.memory_space<smem>>, %arg2: memref<8x1xi32, #tpu.memory_space<vmem>>, %arg3: memref<1x48x16xf32, #tpu.memory_space<vmem>>, %arg4: memref<16x128xf32, #tpu.memory_space<vmem>>, %arg5: memref<32x128xf32, #tpu.memory_space<vmem>>, %arg6: memref<1x128xf32, #tpu.memory_space<vmem>>, %arg7: memref<32x16xf32, #tpu.memory_space<vmem>>, %arg8: memref<1x16xf32, #tpu.memory_space<vmem>>, %arg9: memref<8x16xf32, #tpu.memory_space<vmem>>, %arg10: memref<48x128xf32, #tpu.memory_space<vmem>>) attributes {dimension_semantics = [#tpu.dimension_semantics<parallel>], iteration_bounds = array<i64: 1>, scalar_prefetch = 1 : i64, scratch_operands = 1 : i64, tpu.core_type = #tpu.core_type<tc>, window_params = [{transform_indices = @transform_0, window_bounds = array<i64: 8, 1>}, {transform_indices = @transform_1, window_bounds = array<i64: 1, 48, 16>}, {pipeline_mode = #tpu.pipeline_mode<synchronous>, transform_indices = @transform_2, window_bounds = array<i64: 16, 128>}, {pipeline_mode = #tpu.pipeline_mode<synchronous>, transform_indices = @transform_3, window_bounds = array<i64: 32, 128>}, {pipeline_mode = #tpu.pipeline_mode<synchronous>, transform_indices = @transform_4, window_bounds = array<i64: 1, 128>}, {pipeline_mode = #tpu.pipeline_mode<synchronous>, transform_indices = @transform_5, window_bounds = array<i64: 32, 16>}, {pipeline_mode = #tpu.pipeline_mode<synchronous>, transform_indices = @transform_6, window_bounds = array<i64: 1, 16>}, {transform_indices = @transform_7, window_bounds = array<i64: 8, 16>}]} {
    %c0 = arith.constant 0 : index
    %c0_0 = arith.constant 0 : index
    %c0_1 = arith.constant 0 : index
    %0 = vector.load %arg3[%c0, %c0_0, %c0_1] : memref<1x48x16xf32, #tpu.memory_space<vmem>>, vector<1x48x16xf32>
    %1 = vector.shape_cast %0 : vector<1x48x16xf32> to vector<48x16xf32>
    %c0_2 = arith.constant 0 : index
    %c0_3 = arith.constant 0 : index
    %2 = vector.load %arg4[%c0_2, %c0_3] : memref<16x128xf32, #tpu.memory_space<vmem>>, vector<16x128xf32>
    %cst = arith.constant dense<0.000000e+00> : vector<48x128xf32>
    %3 = tpu.matmul %1, %2, %cst {dimension_numbers = #tpu.dot_dimension_numbers<[1], [0], [0], [1], [0, 0, 1, 1], [], []>} : vector<48x16xf32>, vector<16x128xf32>, vector<48x128xf32> -> vector<48x128xf32>
    %c0_4 = arith.constant 0 : index
    %c0_5 = arith.constant 0 : index
    %4 = vector.load %arg6[%c0_4, %c0_5] : memref<1x128xf32, #tpu.memory_space<vmem>>, vector<1x128xf32>
    %5 = vector.broadcast %4 : vector<1x128xf32> to vector<48x128xf32>
    %6 = arith.addf %3, %5 : vector<48x128xf32>
    %c0_6 = arith.constant 0 : index
    %c0_7 = arith.constant 0 : index
    %7 = vector.load %arg10[%c0_6, %c0_7] : memref<48x128xf32, #tpu.memory_space<vmem>>, vector<48x128xf32>
    tpu.vector_store %arg10[%c0_6, %c0_7], %6 {strides = array<i32>} : memref<48x128xf32, #tpu.memory_space<vmem>>, vector<48x128xf32>,
    %c0_8 = arith.constant 0 : index
    %c0_9 = arith.constant 0 : index
    %8 = vector.load %arg2[%c0_8, %c0_9] : memref<8x1xi32, #tpu.memory_space<vmem>>, vector<8x1xi32>
    %9 = tpu.iota {dimensions = array<i32: 1>} : vector<8x128xi32>
    %c64_i32 = arith.constant 64 : i32
    %10 = vector.broadcast %c64_i32 : i32 to vector<8x128xi32>
    %11 = arith.cmpi sge, %9, %10 : vector<8x128xi32>
    %c96_i32 = arith.constant 96 : i32
    %12 = vector.broadcast %c96_i32 : i32 to vector<8x128xi32>
    %13 = arith.cmpi slt, %9, %12 : vector<8x128xi32>
    %14 = arith.andi %11, %13 : vector<8x128xi1>
    %cst_10 = arith.constant 0.000000e+00 : f32
    %15 = vector.broadcast %cst_10 : f32 to vector<8x32xf32>
    %cst_11 = arith.constant 0.000000e+00 : f32
    %16 = vector.broadcast %cst_11 : f32 to vector<8x32xf32>
    %17 = arith.index_cast %arg0 : i32 to index
    %18 = memref.load %arg1[%17] : memref<1xi32, #tpu.memory_space<smem>>
    %c0_i32 = arith.constant 0 : i32
    %19 = arith.subi %18, %c0_i32 : i32
    %20 = arith.addi %c0_i32, %19 : i32
    %c1_i32 = arith.constant 1 : i32
    %21:2 = scf.for %arg11 = %c0_i32 to %20 step %c1_i32 iter_args(%arg12 = %15, %arg13 = %16) -> (vector<8x32xf32>, vector<8x32xf32>)  : i32 {
      %c8_i32 = arith.constant 8 : i32
      %28 = arith.muli %arg11, %c8_i32 : i32
      %29 = tpu.assume_multiple %28, 8 : i32
      %30 = arith.index_cast %29 : i32 to index
      %c0_19 = arith.constant 0 : index
      %31 = vector.load %arg10[%30, %c0_19] : memref<48x128xf32, #tpu.memory_space<vmem>>, vector<8x128xf32>
      %c0_20 = arith.constant 0 : index
      %c0_21 = arith.constant 0 : index
      %32 = vector.load %arg5[%c0_20, %c0_21] : memref<32x128xf32, #tpu.memory_space<vmem>>, vector<32x128xf32>
      %cst_22 = arith.constant dense<0.000000e+00> : vector<8x128xf32>
      %33 = tpu.matmul %arg12, %32, %cst_22 {dimension_numbers = #tpu.dot_dimension_numbers<[1], [0], [0], [1], [0, 0, 1, 1], [], []>} : vector<8x32xf32>, vector<32x128xf32>, vector<8x128xf32> -> vector<8x128xf32>
      %34 = arith.addf %31, %33 : vector<8x128xf32>
      %35 = math.tanh %34 : vector<8x128xf32>
      %36 = arith.negf %34 : vector<8x128xf32>
      %37 = math.exp %36 : vector<8x128xf32>
      %cst_23 = arith.constant 1.000000e+00 : f32
      %38 = vector.broadcast %cst_23 : f32 to vector<8x128xf32>
      %39 = arith.addf %38, %37 : vector<8x128xf32>
      %40 = arith.divf %38, %39 : vector<8x128xf32>
      %41 = arith.select %14, %35, %40 : vector<8x128xi1>, vector<8x128xf32>
      %42 = vector.extract_strided_slice %41 {offsets = [0, 0], sizes = [8, 32], strides = [1, 1]} : vector<8x128xf32> to vector<8x32xf32>
      %43 = vector.extract_strided_slice %41 {offsets = [0, 32], sizes = [8, 32], strides = [1, 1]} : vector<8x128xf32> to vector<8x32xf32>
      %44 = vector.extract_strided_slice %41 {offsets = [0, 64], sizes = [8, 32], strides = [1, 1]} : vector<8x128xf32> to vector<8x32xf32>
      %45 = vector.extract_strided_slice %41 {offsets = [0, 96], sizes = [8, 32], strides = [1, 1]} : vector<8x128xf32> to vector<8x32xf32>
      %46 = arith.mulf %43, %arg13 : vector<8x32xf32>
      %47 = arith.mulf %42, %44 : vector<8x32xf32>
      %48 = arith.addf %46, %47 : vector<8x32xf32>
      %49 = math.tanh %48 : vector<8x32xf32>
      %50 = arith.mulf %45, %49 : vector<8x32xf32>
      %51 = vector.broadcast %arg11 : i32 to vector<8x1xi32>
      %52 = arith.cmpi slt, %51, %8 : vector<8x1xi32>
      %53 = vector.shape_cast %52 : vector<8x1xi1> to vector<8x1xi1>
      %54 = vector.broadcast %53 : vector<8x1xi1> to vector<8x32xi1>
      %55 = arith.select %54, %50, %arg12 : vector<8x32xi1>, vector<8x32xf32>
      %56 = vector.shape_cast %52 : vector<8x1xi1> to vector<8x1xi1>
      %57 = vector.broadcast %56 : vector<8x1xi1> to vector<8x32xi1>
      %58 = arith.select %57, %48, %arg13 : vector<8x32xi1>, vector<8x32xf32>
      scf.yield %55, %58 : vector<8x32xf32>, vector<8x32xf32>
    }
    %c0_12 = arith.constant 0 : index
    %c0_13 = arith.constant 0 : index
    %22 = vector.load %arg7[%c0_12, %c0_13] : memref<32x16xf32, #tpu.memory_space<vmem>>, vector<32x16xf32>
    %cst_14 = arith.constant dense<0.000000e+00> : vector<8x16xf32>
    %23 = tpu.matmul %21#0, %22, %cst_14 {dimension_numbers = #tpu.dot_dimension_numbers<[1], [0], [0], [1], [0, 0, 1, 1], [], []>} : vector<8x32xf32>, vector<32x16xf32>, vector<8x16xf32> -> vector<8x16xf32>
    %c0_15 = arith.constant 0 : index
    %c0_16 = arith.constant 0 : index
    %24 = vector.load %arg8[%c0_15, %c0_16] : memref<1x16xf32, #tpu.memory_space<vmem>>, vector<1x16xf32>
    %25 = vector.broadcast %24 : vector<1x16xf32> to vector<8x16xf32>
    %26 = arith.addf %23, %25 : vector<8x16xf32>
    %c0_17 = arith.constant 0 : index
    %c0_18 = arith.constant 0 : index
    %27 = vector.load %arg9[%c0_17, %c0_18] : memref<8x16xf32, #tpu.memory_space<vmem>>, vector<8x16xf32>
    tpu.vector_store %arg9[%c0_17, %c0_18], %26 {strides = array<i32>} : memref<8x16xf32, #tpu.memory_space<vmem>>, vector<8x16xf32>,
    return
  }
  func.func @transform_0(%arg0: i32, %arg1: memref<1xi32, #tpu.memory_space<smem>>) -> (i32, i32) {
    %c0_i32 = arith.constant 0 : i32
    %c0_i32_0 = arith.constant 0 : i32
    return %arg0, %c0_i32 : i32, i32
  }
  func.func @transform_1(%arg0: i32, %arg1: memref<1xi32, #tpu.memory_space<smem>>) -> (i32, i32, i32) {
    %c0_i32 = arith.constant 0 : i32
    %c0_i32_0 = arith.constant 0 : i32
    %c0_i32_1 = arith.constant 0 : i32
    return %arg0, %c0_i32, %c0_i32_0 : i32, i32, i32
  }
  func.func @transform_2(%arg0: i32, %arg1: memref<1xi32, #tpu.memory_space<smem>>) -> (i32, i32) {
    %c0_i32 = arith.constant 0 : i32
    %c0_i32_0 = arith.constant 0 : i32
    %c0_i32_1 = arith.constant 0 : i32
    return %c0_i32, %c0_i32_0 : i32, i32
  }
  func.func @transform_3(%arg0: i32, %arg1: memref<1xi32, #tpu.memory_space<smem>>) -> (i32, i32) {
    %c0_i32 = arith.constant 0 : i32
    %c0_i32_0 = arith.constant 0 : i32
    %c0_i32_1 = arith.constant 0 : i32
    return %c0_i32, %c0_i32_0 : i32, i32
  }
  func.func @transform_4(%arg0: i32, %arg1: memref<1xi32, #tpu.memory_space<smem>>) -> (i32, i32) {
    %c0_i32 = arith.constant 0 : i32
    %c0_i32_0 = arith.constant 0 : i32
    %c0_i32_1 = arith.constant 0 : i32
    return %c0_i32, %c0_i32_0 : i32, i32
  }
  func.func @transform_5(%arg0: i32, %arg1: memref<1xi32, #tpu.memory_space<smem>>) -> (i32, i32) {
    %c0_i32 = arith.constant 0 : i32
    %c0_i32_0 = arith.constant 0 : i32
    %c0_i32_1 = arith.constant 0 : i32
    return %c0_i32, %c0_i32_0 : i32, i32
  }
  func.func @transform_6(%arg0: i32, %arg1: memref<1xi32, #tpu.memory_space<smem>>) -> (i32, i32) {
    %c0_i32 = arith.constant 0 : i32
    %c0_i32_0 = arith.constant 0 : i32
    %c0_i32_1 = arith.constant 0 : i32
    return %c0_i32, %c0_i32_0 : i32, i32
  }
  func.func @transform_7(%arg0: i32, %arg1: memref<1xi32, #tpu.memory_space<smem>>) -> (i32, i32) {
    %c0_i32 = arith.constant 0 : i32
    %c0_i32_0 = arith.constant 0 : i32
    return %arg0, %c0_i32 : i32, i32
  }
}

</mosaic_0001>

<llo_original>
// kernel: auvi_subnet_forward.1
$region0: #{auvi_subnet_forward.1}
  #allocation0 [shape = 'u32[]', space=smem, size = 0x4, offset = 0x4, fixed_abs, tag = 'smem constant byte address 0x4 - core index']
  #allocation1 [shape = 'u32[144,128]{1,0:T(1,128)}', space=vmem, size = 0x12000, scoped, tag = 'internal scratch']
  #allocation2 [shape = 'f32[48,128]{1,0:T(8,128)}', space=vmem, size = 0x6000, scoped, tag = 'scratch operand']
  #allocation3 [shape = 's32[1]{0}', space=sflag, size = 0x4, scoped, tag = 'scoped memory for auvi_subnet_forward.1']
  #allocation4 [shape = 's32[1]{0:T(128)S(6)}', space=smem, size = 0x200, scoped, tag = 'prefetched SMEM operand 0']
  %s0 = inlined_call_operand.<no memory space> [shape: s32[1], index: 0, kind: input, shape index: {}]
  %s1 = inlined_call_operand.vmem [shape: s32[8,1], index: 1, kind: input, shape index: {}]
  %s2 = inlined_call_operand.vmem [shape: f32[1,48,16], index: 2, kind: input, shape index: {}]
  %s3 = inlined_call_operand.hbm [shape: f32[16,128], index: 3, kind: input, shape index: {}]
  %s4 = inlined_call_operand.vmem [shape: f32[32,128], index: 4, kind: input, shape index: {}]
  %s5 = inlined_call_operand.vmem [shape: f32[1,128], index: 5, kind: input, shape index: {}]
  %s6 = inlined_call_operand.vmem [shape: f32[32,16], index: 6, kind: input, shape index: {}]
  %s7 = inlined_call_operand.vmem [shape: f32[1,16], index: 7, kind: input, shape index: {}]
  %s8 = inlined_call_operand.hbm [shape: f32[8,16], index: 8, kind: output, shape index: {}]
  %s9 = sld [smem:[#allocation0]]
  $region49: #{auvi_subnet_forward.1} parent=0
    _
  %s11 = ssub.s32 1, %s9
  %s12 = scalar_select 0, %s11, %s9
  %13 = sst [smem:[#allocation4]] %s0
  $region1: #{auvi_subnet_forward.1} parent=0
    #allocation5 [shape = 'u8[8192]{0}', space=vmem, size = 0x2000, scoped, tag = 'input window, operand 3, single buffered']
    #allocation6 [shape = 's32[1]{0}', space=sflag, size = 0x4, scoped, tag = 'scoped memory for auvi_subnet_forward.1']
    #allocation7 [shape = 's32[1]{0}', space=sflag, size = 0x4, scoped, tag = 'scoped memory for auvi_subnet_forward.1']
    #allocation8 [shape = 'u8[4096]{0}', space=vmem, size = 0x1000, scoped, tag = 'output window, operand 0, single buffered']
    %14 = vsyncpa [#allocation6], 0
    %15 = vsyncpa [#allocation7], 0
    // Predicated region
    $region2: #{auvi_subnet_forward.1} parent=1 // pred_check
      _
    $region3: #{auvi_subnet_forward.1} parent=1 // pred_check_branch
      %17 = sbr.rel (0) target = $region5
    $region4: #{auvi_subnet_forward.1} parent=1 // pred_region
      _
    $region5: #{auvi_subnet_forward.1} parent=1 // pred_fallthru
      _
    // Predicated region
    $region6: #{auvi_subnet_forward.1} parent=1 // pred_check
      _
    $region7: #{auvi_subnet_forward.1} parent=1 // pred_check_branch
      %19 = sbr.rel (0) target = $region9
    $region8: #{auvi_subnet_forward.1} parent=1 // pred_region
      _
    $region9: #{auvi_subnet_forward.1} parent=1 // pred_fallthru
      _
    // Predicated region
    $region10: #{auvi_subnet_forward.1} parent=1 // pred_check
      _
    $region11: #{auvi_subnet_forward.1} parent=1 // pred_check_branch
      %21 = sbr.rel (0) target = $region13
    $region12: #{auvi_subnet_forward.1} parent=1 // pred_region
      %s23 = ssub.s32 256, 256
      %24 = vsyncadd [#allocation6], %s23
      %s25 = sshll.u32 [#allocation5], 4
      %s26 = int_to_ptr.vmem [resolvable:$true] %s25
      %31 = dma.hbm_to_vmem [thread:$0]  %s3, 256, %s26, [#allocation6], 128, 128, 8
    $region13: #{auvi_subnet_forward.1} parent=1 // pred_fallthru
      _
    // Predicated region
    $region14: #{auvi_subnet_forward.1} parent=1 // pred_check
      _
    $region15: #{auvi_subnet_forward.1} parent=1 // pred_check_branch
      %33 = sbr.rel (0) target = $region17
    $region16: #{auvi_subnet_forward.1} parent=1 // pred_region
      _
    $region17: #{auvi_subnet_forward.1} parent=1 // pred_fallthru
      _
    // Predicated region
    $region18: #{auvi_subnet_forward.1} parent=1 // pred_check
      _
    $region19: #{auvi_subnet_forward.1} parent=1 // pred_check_branch
      %35 = sbr.rel (0) target = $region21
    $region20: #{auvi_subnet_forward.1} parent=1 // pred_region
      _
    $region21: #{auvi_subnet_forward.1} parent=1 // pred_fallthru
      _
    // Predicated region
    $region22: #{auvi_subnet_forward.1} parent=1 // pred_check
      _
    $region23: #{auvi_subnet_forward.1} parent=1 // pred_check_branch
      %37 = sbr.rel (0) target = $region25
    $region24: #{auvi_subnet_forward.1} parent=1 // pred_region
      _
    $region25: #{auvi_subnet_forward.1} parent=1 // pred_fallthru
      _
    // Predicated region
    $region26: #{auvi_subnet_forward.1} parent=1 // pred_check
      _
    $region27: #{auvi_subnet_forward.1} parent=1 // pred_check_branch
      %39 = sbr.rel (0) target = $region29
    $region28: #{auvi_subnet_forward.1} parent=1 // pred_region
      _
    $region29: #{auvi_subnet_forward.1} parent=1 // pred_fallthru
      _
    // Predicated region
    $region30: #{auvi_subnet_forward.1} parent=1 // pred_check
      _
    $region31: #{auvi_subnet_forward.1} parent=1 // pred_check_branch
      %41 = sbr.rel (0) target = $region33
    $region32: #{auvi_subnet_forward.1} parent=1 // pred_region
      %42 = dma.done [#allocation6], 256
    $region33: #{auvi_subnet_forward.1} parent=1 // pred_fallthru
      _
    %v43 = vld [vmem:[%s2] sm:$0xff]
    %v44 = vld [vmem:[%s2 + $0x8] sm:$0xff]
    %v45 = vld [vmem:[%s2 + $0x10] sm:$0xff]
    %v46 = vld [vmem:[%s2 + $0x18] sm:$0xff]
    %v47 = vld [vmem:[%s2 + $0x20] sm:$0xff]
    %v48 = vld [vmem:[%s2 + $0x28] sm:$0xff]
    %v49 = vld [vmem:[#allocation5] sm:$0xff]
    %v50 = vld [vmem:[#allocation5 + $0x8] sm:$0xff]
    %v51 = vld [vmem:[%s5] sm:$0x1]
    %v53 = vlaneseq
    %v54 = vshrl.u32 %v53, 7
    %v55 = vsub.s32 0, %v54
    %v56 = vrot.slane %v51, %v55
    %vm58 = vcmask 130048
    %v60 = vsel %vm58, %v43, 0
    %v63 = vsel %vm58, %v44, 0
    %v66 = vsel %vm58, %v45, 0
    %v69 = vsel %vm58, %v46, 0
    %v72 = vsel %vm58, %v47, 0
    %v75 = vsel %vm58, %v48, 0
    %77 = vmatprep.subr.mxu0 0.0
    %78 = vmatpush1.msra.mxu0 %v49
    %79 = vmatprep.subr.mxu0 0.0
    %80 = vmatpush1.msra.mxu0 %v50
    %81 = vmatprep.subr.mxu0 0.0
    %82 = vmatpush1.msra.mxu0 0.0
    %83 = vmatprep.subr.mxu0 0.0
    %84 = vmatpush1.msra.mxu0 0.0
    %85 = vmatprep.subr.mxu0 0.0
    %86 = vmatpush1.msra.mxu0 0.0
    %87 = vmatprep.subr.mxu0 0.0
    %88 = vmatpush1.msra.mxu0 0.0
    %89 = vmatprep.subr.mxu0 0.0
    %90 = vmatpush1.msra.mxu0 0.0
    %91 = vmatprep.subr.mxu0 0.0
    %92 = vmatpush1.msra.mxu0 0.0
    %93 = vmatprep.subr.mxu0 0.0
    %94 = vmatpush1.msra.mxu0 0.0
    %95 = vmatprep.subr.mxu0 0.0
    %96 = vmatpush1.msra.mxu0 0.0
    %97 = vmatprep.subr.mxu0 0.0
    %98 = vmatpush1.msra.mxu0 0.0
    %99 = vmatprep.subr.mxu0 0.0
    %100 = vmatpush1.msra.mxu0 0.0
    %101 = vmatprep.subr.mxu0 0.0
    %102 = vmatpush1.msra.mxu0 0.0
    %103 = vmatprep.subr.mxu0 0.0
    %104 = vmatpush1.msra.mxu0 0.0
    %105 = vmatprep.subr.mxu0 0.0
    %106 = vmatpush1.msra.mxu0 0.0
    %107 = vmatprep.subr.mxu0 0.0
    %108 = vmatpush1.msra.mxu0 0.0
    %109 = vmatprep.subr.mxu0 0.0
    %110 = vmatpush1.msra.mxu0 0.0
    %111 = vmatprep.subr.mxu0 0.0
    %112 = vmatpush1.msra.mxu0 0.0
    %113 = vmatprep.subr.mxu0 0.0
    %114 = vmatpush1.msra.mxu0 0.0
    %115 = vmatprep.subr.mxu0 0.0
    %116 = vmatpush1.msra.mxu0 0.0
    %117 = vmatprep.subr.mxu0 0.0
    %118 = vmatpush1.msra.mxu0 0.0
    %119 = vmatprep.subr.mxu0 0.0
    %120 = vmatpush1.msra.mxu0 0.0
    %121 = vmatprep.subr.mxu0 0.0
    %122 = vmatpush1.msra.mxu0 0.0
    %123 = vmatprep.subr.mxu0 0.0
    %124 = vmatpush1.msra.mxu0 0.0
    %125 = vmatprep.subr.mxu0 0.0
    %126 = vmatpush1.msra.mxu0 0.0
    %127 = vmatprep.subr.mxu0 0.0
    %128 = vmatpush1.msra.mxu0 0.0
    %129 = vmatprep.subr.mxu0 0.0
    %130 = vmatpush1.msra.mxu0 0.0
    %131 = vmatprep.subr.mxu0 0.0
    %132 = vmatpush1.msra.mxu0 0.0
    %133 = vmatprep.subr.mxu0 0.0
    %134 = vmatpush1.msra.mxu0 0.0
    %135 = vmatprep.subr.mxu0 0.0
    %136 = vmatpush1.msra.mxu0 0.0
    %137 = vmatprep.subr.mxu0 0.0
    %138 = vmatpush1.msra.mxu0 0.0
    %139 = vmatprep.subr.mxu0 0.0
    %140 = vmatpush1.msra.mxu0 0.0
    %141 = vmatprep.mubr.f32.mxu0 0.0
    %142 = vmatmul.mubr.f32.gmra.mrb[0].mxu0 %v60
    %v143 = vpop.f32.mrb[0].mxu0
    %v144 = vadd.f32 %v56, %v143
    %v145 = vpop.f32.mrb[0].mxu0
    %146 = vmatprep.mubr.f32.mxu0 0.0
    %147 = vmatmul.mubr.f32.gmra.mrb[0].mxu0 %v63
    %v148 = vpop.f32.mrb[0].mxu0
    %v149 = vadd.f32 %v56, %v148
    %v150 = vpop.f32.mrb[0].mxu0
    %151 = vmatprep.mubr.f32.mxu0 0.0
    %152 = vmatmul.mubr.f32.gmra.mrb[0].mxu0 %v66
    %v153 = vpop.f32.mrb[0].mxu0
    %v154 = vadd.f32 %v56, %v153
    %v155 = vpop.f32.mrb[0].mxu0
    %156 = vmatprep.mubr.f32.mxu0 0.0
    %157 = vmatmul.mubr.f32.gmra.mrb[0].mxu0 %v69
    %v158 = vpop.f32.mrb[0].mxu0
    %v159 = vadd.f32 %v56, %v158
    %v160 = vpop.f32.mrb[0].mxu0
    %161 = vmatprep.mubr.f32.mxu0 0.0
    %162 = vmatmul.mubr.f32.gmra.mrb[0].mxu0 %v72
    %v163 = vpop.f32.mrb[0].mxu0
    %v164 = vadd.f32 %v56, %v163
    %v165 = vpop.f32.mrb[0].mxu0
    %166 = vmatprep.mubr.f32.mxu0 0.0
    %167 = vmatmul.mubr.f32.gmra.mrb[0].mxu0 %v75
    %v168 = vpop.f32.mrb[0].mxu0
    %v169 = vadd.f32 %v56, %v168
    %v170 = vpop.f32.mrb[0].mxu0
    %171 = vdwg.mxu0
    %172 = vst [vmem:[#allocation2] sm:$0xff] %v144
    %173 = vst [vmem:[#allocation2 + $0x8] sm:$0xff] %v149
    %174 = vst [vmem:[#allocation2 + $0x10] sm:$0xff] %v154
    %175 = vst [vmem:[#allocation2 + $0x18] sm:$0xff] %v159
    %176 = vst [vmem:[#allocation2 + $0x20] sm:$0xff] %v164
    %177 = vst [vmem:[#allocation2 + $0x28] sm:$0xff] %v169
    %v178 = vld [vmem:[%s1] sm:$0xff]
    %v179 = vlaneseq
    %v180 = vand.u32 %v179, 127
    %vm181 = vcmp.ge.s32.totalorder %v180, 64
    %vm182 = vcmp.lt.s32.totalorder %v180, 96
    %vm183 = vmand %vm181, %vm182
    %s184 = sld [smem:[#allocation4]]
    // While loop
    $region34: #{auvi_subnet_forward.1} parent=1 // loop_pre_header
      _
    $region35: #{auvi_subnet_forward.1} parent=1 // loop_header
      %s186 = sphi 0, %s188
      %p187 = scmp.ge.s32.totalorder %s186, %s184
      %v191 = vphi 0.0, %v309
      %v192 = vphi 0.0, %v310
    $region36: #{auvi_subnet_forward.1} parent=1 // loop_header_branch
      %190 = sbr.rel (%p187) target = $region40
    $region37: #{auvi_subnet_forward.1} parent=1 // loop_body
      %s193 = smul.u32 %s186, 8
      %s194 = scalar_lea.vmem [#allocation2], %s193
      %v195 = vld [vmem:[%s194] sm:$0xff]
      %v196 = vld [vmem:[%s4] sm:$0xff]
      %v197 = vld [vmem:[%s4 + $0x8] sm:$0xff]
      %v198 = vld [vmem:[%s4 + $0x10] sm:$0xff]
      %v199 = vld [vmem:[%s4 + $0x18] sm:$0xff]
      %201 = vrot.lane.b32.xlu0 %v191, 32
      %v202 = vpop.permute.xlu0 %201
      %vm203 = vcmask 261120
      %v204 = vsel %vm203, %v202, 0
      %206 = vmatprep.subr.mxu0 0.0
      %207 = vmatpush1.msra.mxu0 %v196
      %208 = vmatprep.subr.mxu0 0.0
      %209 = vmatpush1.msra.mxu0 %v197
      %210 = vmatprep.subr.mxu0 0.0
      %211 = vmatpush1.msra.mxu0 %v198
      %212 = vmatprep.subr.mxu0 0.0
      %213 = vmatpush1.msra.mxu0 %v199
      %214 = vmatprep.subr.mxu0 0.0
      %215 = vmatpush1.msra.mxu0 0.0
      %216 = vmatprep.subr.mxu0 0.0
      %217 = vmatpush1.msra.mxu0 0.0
      %218 = vmatprep.subr.mxu0 0.0
      %219 = vmatpush1.msra.mxu0 0.0
      %220 = vmatprep.subr.mxu0 0.0
      %221 = vmatpush1.msra.mxu0 0.0
      %222 = vmatprep.subr.mxu0 0.0
      %223 = vmatpush1.msra.mxu0 0.0
      %224 = vmatprep.subr.mxu0 0.0
      %225 = vmatpush1.msra.mxu0 0.0
      %226 = vmatprep.subr.mxu0 0.0
      %227 = vmatpush1.msra.mxu0 0.0
      %228 = vmatprep.subr.mxu0 0.0
      %229 = vmatpush1.msra.mxu0 0.0
      %230 = vmatprep.subr.mxu0 0.0
      %231 = vmatpush1.msra.mxu0 0.0
      %232 = vmatprep.subr.mxu0 0.0
      %233 = vmatpush1.msra.mxu0 0.0
      %234 = vmatprep.subr.mxu0 0.0
      %235 = vmatpush1.msra.mxu0 0.0
      %236 = vmatprep.subr.mxu0 0.0
      %237 = vmatpush1.msra.mxu0 0.0
      %238 = vmatprep.subr.mxu0 0.0
      %239 = vmatpush1.msra.mxu0 0.0
      %240 = vmatprep.subr.mxu0 0.0
      %241 = vmatpush1.msra.mxu0 0.0
      %242 = vmatprep.subr.mxu0 0.0
      %243 = vmatpush1.msra.mxu0 0.0
      %244 = vmatprep.subr.mxu0 0.0
      %245 = vmatpush1.msra.mxu0 0.0
      %246 = vmatprep.subr.mxu0 0.0
      %247 = vmatpush1.msra.mxu0 0.0
      %248 = vmatprep.subr.mxu0 0.0
      %249 = vmatpush1.msra.mxu0 0.0
      %250 = vmatprep.subr.mxu0 0.0
      %251 = vmatpush1.msra.mxu0 0.0
      %252 = vmatprep.subr.mxu0 0.0
      %253 = vmatpush1.msra.mxu0 0.0
      %254 = vmatprep.subr.mxu0 0.0
      %255 = vmatpush1.msra.mxu0 0.0
      %256 = vmatprep.subr.mxu0 0.0
      %257 = vmatpush1.msra.mxu0 0.0
      %258 = vmatprep.subr.mxu0 0.0
      %259 = vmatpush1.msra.mxu0 0.0
      %260 = vmatprep.subr.mxu0 0.0
      %261 = vmatpush1.msra.mxu0 0.0
      %262 = vmatprep.subr.mxu0 0.0
      %263 = vmatpush1.msra.mxu0 0.0
      %264 = vmatprep.subr.mxu0 0.0
      %265 = vmatpush1.msra.mxu0 0.0
      %266 = vmatprep.subr.mxu0 0.0
      %267 = vmatpush1.msra.mxu0 0.0
      %268 = vmatprep.subr.mxu0 0.0
      %269 = vmatpush1.msra.mxu0 0.0
      %270 = vmatprep.mubr.f32.mxu0 0.0
      %271 = vmatmul.mubr.f32.gmra.mrb[0].mxu0 %v204
      %v272 = vpop.f32.mrb[0].mxu0
      %v273 = vadd.f32 0.0, %v272
      %v274 = vpop.f32.mrb[0].mxu0
      %275 = vdwg.mxu0
      %v276 = vadd.f32 %v195, %v273
      %v277 = vtanh.pop %v276
      %v278 = vxor.u32 %v276, 2147483648
      %v279 = vmul.f32 %v278, 1.442695
      %v280 = vpow.pop %v279
      %v281 = vadd.f32 %v280, 1.0
      %v282 = vrcp.pop %v281
      %v283 = vmul.f32 1.0, %v282
      %v284 = vsel %vm183, %v277, %v283
      %v285 = vmul.f32 %v284, %v192
      %287 = vrot.lane.b32.xlu0 %v284, 64
      %v288 = vpop.permute.xlu0 %287
      %v290 = vmul.f32 %v284, %v288
      %292 = vrot.lane.b32.xlu0 %v290, 32
      %v293 = vpop.permute.xlu0 %292
      %v295 = vadd.f32 %v285, %v293
      %v296 = vtanh.pop %v295
      %298 = vrot.lane.b32.xlu0 %v296, 64
      %v299 = vpop.permute.xlu0 %298
      %v301 = vmul.f32 %v284, %v299
      %v302 = vstv %s186
      %vm303 = vcmp.lt.s32.totalorder %v302, %v178
      %v304 = vsel %vm303, 1, 0
      %305 = vset.pattern.permute.xlu0 0
      %306 = vperm.xlu0 %305, %v304
      %v307 = vpop.permute.xlu0 %306
      %vm308 = vcmp.eq.s32.totalorder %v307, 1
      %v309 = vsel %vm308, %v301, %v191
      %v310 = vsel %vm308, %v295, %v192
    $region38: #{auvi_subnet_forward.1} parent=1 // loop_footer
      %s188 = sadd.s32 %s186, 1
    $region39: #{auvi_subnet_forward.1} parent=1 // loop_footer_branch
      %185 = sbr.rel target = $region35
    $region40: #{auvi_subnet_forward.1} parent=1 // loop_exit
      _
    %v311 = vld [vmem:[%s6] sm:$0xff]
    %v312 = vld [vmem:[%s6 + $0x8] sm:$0xff]
    %v313 = vld [vmem:[%s6 + $0x10] sm:$0xff]
    %v314 = vld [vmem:[%s6 + $0x18] sm:$0xff]
    %v315 = vld [vmem:[%s7] sm:$0x1]
    %v317 = vlaneseq
    %v318 = vshrl.u32 %v317, 7
    %v319 = vsub.s32 0, %v318
    %v320 = vrot.slane %v315, %v319
    %323 = vrot.lane.b32.xlu0 %v191, 32
    %v324 = vpop.permute.xlu0 %323
    %vm325 = vcmask 261120
    %v326 = vsel %vm325, %v324, 0
    %328 = vmatprep.subr.mxu0 0.0
    %329 = vmatpush1.msra.mxu0 %v311
    %330 = vmatprep.subr.mxu0 0.0
    %331 = vmatpush1.msra.mxu0 %v312
    %332 = vmatprep.subr.mxu0 0.0
    %333 = vmatpush1.msra.mxu0 %v313
    %334 = vmatprep.subr.mxu0 0.0
    %335 = vmatpush1.msra.mxu0 %v314
    %336 = vmatprep.subr.mxu0 0.0
    %337 = vmatpush1.msra.mxu0 0.0
    %338 = vmatprep.subr.mxu0 0.0
    %339 = vmatpush1.msra.mxu0 0.0
    %340 = vmatprep.subr.mxu0 0.0
    %341 = vmatpush1.msra.mxu0 0.0
    %342 = vmatprep.subr.mxu0 0.0
    %343 = vmatpush1.msra.mxu0 0.0
    %344 = vmatprep.subr.mxu0 0.0
    %345 = vmatpush1.msra.mxu0 0.0
    %346 = vmatprep.subr.mxu0 0.0
    %347 = vmatpush1.msra.mxu0 0.0
    %348 = vmatprep.subr.mxu0 0.0
    %349 = vmatpush1.msra.mxu0 0.0
    %350 = vmatprep.subr.mxu0 0.0
    %351 = vmatpush1.msra.mxu0 0.0
    %352 = vmatprep.subr.mxu0 0.0
    %353 = vmatpush1.msra.mxu0 0.0
    %354 = vmatprep.subr.mxu0 0.0
    %355 = vmatpush1.msra.mxu0 0.0
    %356 = vmatprep.subr.mxu0 0.0
    %357 = vmatpush1.msra.mxu0 0.0
    %358 = vmatprep.subr.mxu0 0.0
    %359 = vmatpush1.msra.mxu0 0.0
    %360 = vmatprep.subr.mxu0 0.0
    %361 = vmatpush1.msra.mxu0 0.0
    %362 = vmatprep.subr.mxu0 0.0
    %363 = vmatpush1.msra.mxu0 0.0
    %364 = vmatprep.subr.mxu0 0.0
    %365 = vmatpush1.msra.mxu0 0.0
    %366 = vmatprep.subr.mxu0 0.0
    %367 = vmatpush1.msra.mxu0 0.0
    %368 = vmatprep.subr.mxu0 0.0
    %369 = vmatpush1.msra.mxu0 0.0
    %370 = vmatprep.subr.mxu0 0.0
    %371 = vmatpush1.msra.mxu0 0.0
    %372 = vmatprep.subr.mxu0 0.0
    %373 = vmatpush1.msra.mxu0 0.0
    %374 = vmatprep.subr.mxu0 0.0
    %375 = vmatpush1.msra.mxu0 0.0
    %376 = vmatprep.subr.mxu0 0.0
    %377 = vmatpush1.msra.mxu0 0.0
    %378 = vmatprep.subr.mxu0 0.0
    %379 = vmatpush1.msra.mxu0 0.0
    %380 = vmatprep.subr.mxu0 0.0
    %381 = vmatpush1.msra.mxu0 0.0
    %382 = vmatprep.subr.mxu0 0.0
    %383 = vmatpush1.msra.mxu0 0.0
    %384 = vmatprep.subr.mxu0 0.0
    %385 = vmatpush1.msra.mxu0 0.0
    %386 = vmatprep.subr.mxu0 0.0
    %387 = vmatpush1.msra.mxu0 0.0
    %388 = vmatprep.subr.mxu0 0.0
    %389 = vmatpush1.msra.mxu0 0.0
    %390 = vmatprep.subr.mxu0 0.0
    %391 = vmatpush1.msra.mxu0 0.0
    %392 = vmatprep.mubr.f32.mxu0 0.0
    %393 = vmatmul.mubr.f32.gmra.mrb[0].mxu0 %v326
    %v394 = vpop.f32.mrb[0].mxu0
    %v395 = vadd.f32 %v320, %v394
    %v396 = vpop.f32.mrb[0].mxu0
    %397 = vdwg.mxu0
    %398 = vst.msk [vmem:[#allocation8] sm:$0xff] %vm58, %v395
    // Predicated region
    $region41: #{auvi_subnet_forward.1} parent=1 // pred_check
      _
    $region42: #{auvi_subnet_forward.1} parent=1 // pred_check_branch
      %400 = sbr.rel (0) target = $region44
    $region43: #{auvi_subnet_forward.1} parent=1 // pred_region
      %s402 = ssub.s32 128, 128
      %403 = vsyncadd [#allocation7], %s402
      %s405 = sshll.u32 [#allocation8], 4
      %s406 = int_to_ptr.vmem [resolvable:$true] %s405
      %408 = dma.vmem_to_hbm [thread:$0]  %s406, 128, %s8, [#allocation7]
    $region44: #{auvi_subnet_forward.1} parent=1 // pred_fallthru
      _
    // Predicated region
    $region45: #{auvi_subnet_forward.1} parent=1 // pred_check
      _
    $region46: #{auvi_subnet_forward.1} parent=1 // pred_check_branch
      %410 = sbr.rel (0) target = $region48
    $region47: #{auvi_subnet_forward.1} parent=1 // pred_region
      %411 = dma.done [#allocation7], 128
    $region48: #{auvi_subnet_forward.1} parent=1 // pred_fallthru
      _
    %412 = vsyncpa [#allocation6], 1
    %413 = vsyncpa [#allocation7], 1

</llo_original>
